<compile_context>
chip_gen: v5e
topology: v5e:2x2
jax: 0.10.0
libtpu: 0.0.40
codegen_flags: <defaults>
</compile_context>

<pallas_src>
import functools
import math

import jax
import jax.numpy as jnp
from jax.experimental import pallas as pl
from jax.experimental.pallas import tpu as pltpu

IGNORE_INDEX = -100
_LANE = 128
_T_MAX = 64 * 1024                     # max pixel-tile width (lanes)
_LOGITS_TILE_BYTES = 2 * 1024 * 1024   # f32 compute budget per logits tile


def _ce_kl_kernel(logits_ref, target_ref, mean_ref, logvar_ref,
                  ce_sum_ref, ce_cnt_ref, kl_ref,
                  *, hw_f, num_classes, fold):
    t = pl.program_id(1)

    # ---- per-batch init + one-shot KL at the first pixel tile of this row ----
    @pl.when(t == 0)
    def _():
        ce_sum_ref[...] = jnp.zeros_like(ce_sum_ref)
        ce_cnt_ref[...] = jnp.zeros_like(ce_cnt_ref)
        mu = mean_ref[...].astype(jnp.float32)                          # (1,1,D)
        lv = jnp.clip(logvar_ref[...].astype(jnp.float32), -30.0, 20.0)
        kl = 0.5 * (mu * mu + jnp.exp(lv) - 1.0 - lv)
        kl_ref[...] = jnp.sum(kl, keepdims=True)                        # (1,1,1)

    # ---- cross entropy over this pixel tile ----
    logits = logits_ref[0].astype(jnp.float32)   # (C*fold, T), lane-dense pixels
    tgt = target_ref[0]                          # (fold, T) int32
    tile = logits.shape[-1]

    # Ragged-tile mask: global (folded) pixel column index < HW // fold.
    col = t * tile + jax.lax.broadcasted_iota(jnp.int32, tgt.shape, 1)
    valid = jnp.logical_and(tgt != IGNORE_INDEX, col < hw_f)            # (fold, T)

    if fold == 1:
        # Generic path (any C): classes on sublanes, vectorized class reduce.
        m = jnp.max(logits, axis=0, keepdims=True)                      # (1, T)
        e = jnp.exp(logits - m)
        lse = m + jnp.log(jnp.sum(e, axis=0, keepdims=True))            # (1, T)
        cls_ids = jax.lax.broadcasted_iota(jnp.int32, logits.shape, 0)
        picked = jnp.sum(jnp.where(cls_ids == tgt, logits, 0.0),
                         axis=0, keepdims=True)                         # (1, T)
    else:
        # Sublane-dense path (C*fold == 8): rows [k*fold:(k+1)*fold] hold
        # class k for `fold` pixel chunks. Class reduction = elementwise VPU
        # ops over consecutive-sublane sub-blocks; exp runs once on the full
        # dense (8, T) block.
        m = logits[0:fold]
        for k in range(1, num_classes):
            m = jnp.maximum(m, logits[k * fold:(k + 1) * fold])         # (fold, T)
        mb = jnp.concatenate([m] * num_classes, axis=0)                 # (8, T)
        e = jnp.exp(logits - mb)                                        # dense EUP
        s = e[0:fold]
        picked = jnp.where(tgt == 0, logits[0:fold], 0.0)
        for k in range(1, num_classes):
            s = s + e[k * fold:(k + 1) * fold]
            picked = picked + jnp.where(tgt == k,
                                        logits[k * fold:(k + 1) * fold], 0.0)
        lse = m + jnp.log(s)                                            # (fold, T)

    per_px = jnp.where(valid, lse - picked, 0.0)
    ce_sum_ref[...] += jnp.sum(per_px).reshape(1, 1, 1)
    ce_cnt_ref[...] += jnp.sum(valid.astype(jnp.float32)).reshape(1, 1, 1)


def _choose_pixel_tile(hw_f, rows):
    """Pixel-tile width in lanes. Either the whole (folded) pixel row (legal:
    block dim == array dim) or a multiple of 128 sized so one f32 logits tile
    stays within _LOGITS_TILE_BYTES (ragged last tile is masked in-kernel)."""
    t = _LOGITS_TILE_BYTES // (4 * rows)
    t = max(_LANE, (t // _LANE) * _LANE)
    t = min(t, _T_MAX)
    if hw_f <= t:
        return hw_f
    return t


def segmentation_ae_loss(target, reconstructions, post_mean, post_logvar,
                         kl_weight=1.0, split="train", tile_lanes=None):
    """target: (B, H, W) int class indices; reconstructions: (B, C, H, W) logits;
    post_mean / post_logvar: (B, ...) posterior parameters (same batch dim)."""
    B, C, H, W = reconstructions.shape
    HW = H * W
    assert post_mean.shape == post_logvar.shape and post_mean.shape[0] == B

    # Sublane packing: for C in {1, 2, 4} fold 8//C pixel chunks into the class
    # axis (free row-major reshape) so compute uses dense 8-sublane vregs.
    fold = 8 // C if (C < 8 and 8 % C == 0 and HW % (8 // C) == 0) else 1
    HW_f = HW // fold
    rows = C * fold

    if tile_lanes is None:
        T = _choose_pixel_tile(HW_f, rows)
    else:
        assert tile_lanes % _LANE == 0
        T = tile_lanes
    NT = -(-HW_f // T)   # ceil-div; last tile may be ragged, masked in-kernel

    # Free (row-major) reshapes; native dtypes kept in HBM, cast in-kernel.
    logits3 = reconstructions.reshape(B, rows, HW_f)
    target3 = target.reshape(B, fold, HW_f).astype(jnp.int32)

    D = math.prod(post_mean.shape[1:])
    mean3 = post_mean.reshape(B, 1, D)
    logvar3 = post_logvar.reshape(B, 1, D)
    # TODO(synk): for very large latents D, compute the KL term in plain JAX
    # (or block it over D) instead of keeping a (1, D) block per batch row.

    itemsize = jnp.dtype(reconstructions.dtype).itemsize
    est = (2 * (rows * T * itemsize + fold * T * 4
                + 2 * D * jnp.dtype(post_mean.dtype).itemsize)
           + 6 * rows * T * 4 + (4 << 20))
    vmem_limit = int(min(max(est, 32 << 20), 48 << 20))

    kernel = functools.partial(_ce_kl_kernel, hw_f=HW_f,
                               num_classes=C, fold=fold)

    out_shapes = (
        jax.ShapeDtypeStruct((B, 1, 1), jnp.float32),   # per-batch ce sum
        jax.ShapeDtypeStruct((B, 1, 1), jnp.float32),   # per-batch valid count
        jax.ShapeDtypeStruct((B, 1, 1), jnp.float32),   # per-batch kl sum
    )

    ce_sum, ce_cnt, kl = pl.pallas_call(
        kernel,
        out_shape=out_shapes,
        grid=(B, NT),
        in_specs=[
            pl.BlockSpec((1, rows, T), lambda b, t: (b, 0, t)),   # logits tile
            pl.BlockSpec((1, fold, T), lambda b, t: (b, 0, t)),   # target tile
            pl.BlockSpec((1, 1, D), lambda b, t: (b, 0, 0)),      # posterior mean
            pl.BlockSpec((1, 1, D), lambda b, t: (b, 0, 0)),      # posterior logvar
        ],
        out_specs=(
            pl.BlockSpec((1, 1, 1), lambda b, t: (b, 0, 0)),
            pl.BlockSpec((1, 1, 1), lambda b, t: (b, 0, 0)),
            pl.BlockSpec((1, 1, 1), lambda b, t: (b, 0, 0)),
        ),
        compiler_params=pltpu.CompilerParams(
            # Per-batch partial outputs -> batch axis is parallel-safe
            # (uses both TensorCores on v7x); pixel axis is the reduction.
            dimension_semantics=("parallel", "arbitrary"),
            vmem_limit_bytes=vmem_limit),
    )(logits3, target3, mean3, logvar3)

    # NOTE: if every pixel is ignore_index this divides by zero (nan),
    # matching PyTorch's CrossEntropyLoss behavior.
    ce_loss = jnp.sum(ce_sum) / jnp.sum(ce_cnt)
    kl_loss = jnp.sum(kl) / B               # torch.sum(kl) / kl.shape[0]
    loss = ce_loss + kl_weight * kl_loss

    log = {
        f"{split}/total_loss": loss,
        f"{split}/kl_loss": kl_loss,
        f"{split}/ce_loss": ce_loss,
    }
    return loss, log


def _reference(target, reconstructions, post_mean, post_logvar, kl_weight=1.0):
    # Pure-JAX reference reproducing the PyTorch semantics.
    B, C, H, W = reconstructions.shape
    logits = jnp.transpose(reconstructions, (0, 2, 3, 1)).reshape(-1, C)
    tgt = target.reshape(-1)
    logp = jax.nn.log_softmax(logits.astype(jnp.float32), axis=-1)
    valid = tgt != IGNORE_INDEX
    tgt_safe = jnp.where(valid, tgt, 0)
    nll = -jnp.take_along_axis(logp, tgt_safe[:, None], axis=-1)[:, 0]
    ce = jnp.sum(jnp.where(valid, nll, 0.0)) / jnp.sum(valid.astype(jnp.float32))
    mu = post_mean.reshape(post_mean.shape[0], -1).astype(jnp.float32)
    lv = jnp.clip(post_logvar.reshape(post_logvar.shape[0], -1).astype(jnp.float32),
                  -30.0, 20.0)
    kl = 0.5 * jnp.sum(mu * mu + jnp.exp(lv) - 1.0 - lv, axis=-1)
    kl_loss = jnp.sum(kl) / kl.shape[0]
    return ce + kl_weight * kl_loss


def _run_case(key, B, C, H, W, Cz, Hz, Wz, tile_lanes=None):
    k_logit, k_tgt, k_mu, k_lv, k_ign = jax.random.split(key, 5)
    recon = jax.random.normal(k_logit, (B, C, H, W), dtype=jnp.float32)
    target = jax.random.randint(k_tgt, (B, H, W), 0, C, dtype=jnp.int32)
    ign = jax.random.bernoulli(k_ign, 0.1, (B, H, W))
    target = jnp.where(ign, IGNORE_INDEX, target)
    post_mean = 0.1 * jax.random.normal(k_mu, (B, Cz, Hz, Wz), dtype=jnp.float32)
    post_logvar = 0.1 * jax.random.normal(k_lv, (B, Cz, Hz, Wz), dtype=jnp.float32)

    loss, _ = segmentation_ae_loss(target, recon, post_mean, post_logvar,
                                   kl_weight=1.0, split="train",
                                   tile_lanes=tile_lanes)
    loss = jax.block_until_ready(loss)
    ref = jax.block_until_ready(
        _reference(target, recon, post_mean, post_logvar, 1.0))
    assert jnp.allclose(loss, ref, rtol=1e-4, atol=1e-4), (loss, ref)


if __name__ == "__main__":
    key = jax.random.PRNGKey(0)
    k1, k2, k3 = jax.random.split(key, 3)
    # (1) sublane-packed path (C=4 -> fold=2), single pixel tile per batch row.
    _run_case(k1, B=2, C=4, H=16, W=16, Cz=4, Hz=8, Wz=8)
    # (2) generic path (C=5 -> fold=1) with a ragged (in-kernel masked) tile
    #     and multi-tile accumulation along the pixel axis.
    _run_case(k2, B=2, C=5, H=12, W=12, Cz=4, Hz=8, Wz=8, tile_lanes=128)
    # (3) sublane-packed path with multi-tile accumulation (forced 128 lanes).
    _run_case(k3, B=2, C=4, H=32, W=32, Cz=4, Hz=8, Wz=8, tile_lanes=128)
    print("KERNEL_OK")
</pallas_src>

<mosaic_0001>
module attributes {stable_mosaic.version = 11 : i64} {
  func.func @_ce_kl_kernel(%arg0: i32, %arg1: i32, %arg2: memref<1x8x128xf32, #tpu.memory_space<vmem>>, %arg3: memref<1x2x128xi32, #tpu.memory_space<vmem>>, %arg4: memref<1x1x256xf32, #tpu.memory_space<vmem>>, %arg5: memref<1x1x256xf32, #tpu.memory_space<vmem>>, %arg6: memref<1x1x1xf32, #tpu.memory_space<vmem>>, %arg7: memref<1x1x1xf32, #tpu.memory_space<vmem>>, %arg8: memref<1x1x1xf32, #tpu.memory_space<vmem>>) attributes {dimension_semantics = [#tpu.dimension_semantics<parallel>, #tpu.dimension_semantics<arbitrary>], iteration_bounds = array<i64: 2, 1>, scalar_prefetch = 0 : i64, scratch_operands = 0 : i64, tpu.core_type = #tpu.core_type<tc>, window_params = [{transform_indices = @transform_0, window_bounds = array<i64: 1, 8, 128>}, {transform_indices = @transform_1, window_bounds = array<i64: 1, 2, 128>}, {transform_indices = @transform_2, window_bounds = array<i64: 1, 1, 256>}, {transform_indices = @transform_3, window_bounds = array<i64: 1, 1, 256>}, {transform_indices = @transform_4, window_bounds = array<i64: 1, 1, 1>}, {transform_indices = @transform_5, window_bounds = array<i64: 1, 1, 1>}, {transform_indices = @transform_6, window_bounds = array<i64: 1, 1, 1>}]} {
    %c0_i32 = arith.constant 0 : i32
    %0 = arith.cmpi eq, %arg1, %c0_i32 : i32
    %1 = arith.extui %0 : i1 to i32
    %c0_i32_0 = arith.constant 0 : i32
    %2 = arith.cmpi ne, %1, %c0_i32_0 : i32
    scf.if %2 {
      %cst_26 = arith.constant 0.000000e+00 : f32
      %79 = vector.broadcast %cst_26 : f32 to vector<1x1x1xf32>
      %c0_27 = arith.constant 0 : index
      %c0_28 = arith.constant 0 : index
      %c0_29 = arith.constant 0 : index
      %80 = vector.load %arg6[%c0_27, %c0_28, %c0_29] : memref<1x1x1xf32, #tpu.memory_space<vmem>>, vector<1x1x1xf32>
      tpu.vector_store %arg6[%c0_27, %c0_28, %c0_29], %79 {strides = array<i32>} : memref<1x1x1xf32, #tpu.memory_space<vmem>>, vector<1x1x1xf32>,
      %cst_30 = arith.constant 0.000000e+00 : f32
      %81 = vector.broadcast %cst_30 : f32 to vector<1x1x1xf32>
      %c0_31 = arith.constant 0 : index
      %c0_32 = arith.constant 0 : index
      %c0_33 = arith.constant 0 : index
      %82 = vector.load %arg7[%c0_31, %c0_32, %c0_33] : memref<1x1x1xf32, #tpu.memory_space<vmem>>, vector<1x1x1xf32>
      tpu.vector_store %arg7[%c0_31, %c0_32, %c0_33], %81 {strides = array<i32>} : memref<1x1x1xf32, #tpu.memory_space<vmem>>, vector<1x1x1xf32>,
      %c0_34 = arith.constant 0 : index
      %c0_35 = arith.constant 0 : index
      %c0_36 = arith.constant 0 : index
      %83 = vector.load %arg4[%c0_34, %c0_35, %c0_36] : memref<1x1x256xf32, #tpu.memory_space<vmem>>, vector<1x1x256xf32>
      %c0_37 = arith.constant 0 : index
      %c0_38 = arith.constant 0 : index
      %c0_39 = arith.constant 0 : index
      %84 = vector.load %arg5[%c0_37, %c0_38, %c0_39] : memref<1x1x256xf32, #tpu.memory_space<vmem>>, vector<1x1x256xf32>
      %cst_40 = arith.constant -3.000000e+01 : f32
      %cst_41 = arith.constant 2.000000e+01 : f32
      %85 = vector.broadcast %cst_40 : f32 to vector<1x1x256xf32>
      %86 = arith.maximumf %85, %84 : vector<1x1x256xf32>
      %87 = vector.broadcast %cst_41 : f32 to vector<1x1x256xf32>
      %88 = arith.minimumf %87, %86 : vector<1x1x256xf32>
      %89 = arith.mulf %83, %83 : vector<1x1x256xf32>
      %90 = math.exp %88 : vector<1x1x256xf32>
      %91 = arith.addf %89, %90 : vector<1x1x256xf32>
      %cst_42 = arith.constant 1.000000e+00 : f32
      %92 = vector.broadcast %cst_42 : f32 to vector<1x1x256xf32>
      %93 = arith.subf %91, %92 : vector<1x1x256xf32>
      %94 = arith.subf %93, %88 : vector<1x1x256xf32>
      %cst_43 = arith.constant 5.000000e-01 : f32
      %95 = vector.broadcast %cst_43 : f32 to vector<1x1x256xf32>
      %96 = arith.mulf %95, %94 : vector<1x1x256xf32>
      %97 = vector.shape_cast %96 : vector<1x1x256xf32> to vector<1x1x1x256xf32>
      %cst_44 = arith.constant dense<0.000000e+00> : vector<1xf32>
      %98 = vector.multi_reduction <add>, %97, %cst_44 [1, 2, 3] : vector<1x1x1x256xf32> to vector<1xf32>
      %99 = vector.shape_cast %98 : vector<1xf32> to vector<1x1x1x1xf32>
      %100 = vector.extract %99[0, 0, 0, 0] : f32 from vector<1x1x1x1xf32>
      %101 = vector.broadcast %100 : f32 to vector<1x1x1xf32>
      %c0_45 = arith.constant 0 : index
      %c0_46 = arith.constant 0 : index
      %c0_47 = arith.constant 0 : index
      %102 = vector.load %arg8[%c0_45, %c0_46, %c0_47] : memref<1x1x1xf32, #tpu.memory_space<vmem>>, vector<1x1x1xf32>
      tpu.vector_store %arg8[%c0_45, %c0_46, %c0_47], %101 {strides = array<i32>} : memref<1x1x1xf32, #tpu.memory_space<vmem>>, vector<1x1x1xf32>,
    } else {
    }
    %c0 = arith.constant 0 : index
    %c0_1 = arith.constant 0 : index
    %c0_2 = arith.constant 0 : index
    %3 = vector.load %arg2[%c0, %c0_1, %c0_2] : memref<1x8x128xf32, #tpu.memory_space<vmem>>, vector<1x8x128xf32>
    %4 = vector.shape_cast %3 : vector<1x8x128xf32> to vector<8x128xf32>
    %c0_3 = arith.constant 0 : index
    %c0_4 = arith.constant 0 : index
    %c0_5 = arith.constant 0 : index
    %5 = vector.load %arg3[%c0_3, %c0_4, %c0_5] : memref<1x2x128xi32, #tpu.memory_space<vmem>>, vector<1x2x128xi32>
    %6 = vector.shape_cast %5 : vector<1x2x128xi32> to vector<2x128xi32>
    %c128_i32 = arith.constant 128 : i32
    %7 = arith.muli %arg1, %c128_i32 : i32
    %8 = tpu.iota {dimensions = array<i32: 1>} : vector<2x128xi32>
    %9 = vector.broadcast %7 : i32 to vector<2x128xi32>
    %10 = arith.addi %9, %8 : vector<2x128xi32>
    %c-100_i32 = arith.constant -100 : i32
    %11 = vector.broadcast %c-100_i32 : i32 to vector<2x128xi32>
    %12 = arith.cmpi ne, %6, %11 : vector<2x128xi32>
    %c128_i32_6 = arith.constant 128 : i32
    %13 = vector.broadcast %c128_i32_6 : i32 to vector<2x128xi32>
    %14 = arith.cmpi slt, %10, %13 : vector<2x128xi32>
    %15 = arith.andi %12, %14 : vector<2x128xi1>
    %16 = vector.extract_strided_slice %4 {offsets = [0, 0], sizes = [2, 128], strides = [1, 1]} : vector<8x128xf32> to vector<2x128xf32>
    %17 = vector.extract_strided_slice %4 {offsets = [2, 0], sizes = [2, 128], strides = [1, 1]} : vector<8x128xf32> to vector<2x128xf32>
    %18 = arith.maximumf %16, %17 : vector<2x128xf32>
    %19 = vector.extract_strided_slice %4 {offsets = [4, 0], sizes = [2, 128], strides = [1, 1]} : vector<8x128xf32> to vector<2x128xf32>
    %20 = arith.maximumf %18, %19 : vector<2x128xf32>
    %21 = vector.extract_strided_slice %4 {offsets = [6, 0], sizes = [2, 128], strides = [1, 1]} : vector<8x128xf32> to vector<2x128xf32>
    %22 = arith.maximumf %20, %21 : vector<2x128xf32>
    %23 = tpu.concatenate %22, %22, %22, %22 in 0 : vector<2x128xf32>, vector<2x128xf32>, vector<2x128xf32>, vector<2x128xf32> -> vector<8x128xf32>
    %24 = arith.subf %4, %23 : vector<8x128xf32>
    %25 = math.exp %24 : vector<8x128xf32>
    %26 = vector.extract_strided_slice %25 {offsets = [0, 0], sizes = [2, 128], strides = [1, 1]} : vector<8x128xf32> to vector<2x128xf32>
    %c0_i32_7 = arith.constant 0 : i32
    %27 = vector.broadcast %c0_i32_7 : i32 to vector<2x128xi32>
    %28 = arith.cmpi eq, %6, %27 : vector<2x128xi32>
    %29 = vector.extract_strided_slice %4 {offsets = [0, 0], sizes = [2, 128], strides = [1, 1]} : vector<8x128xf32> to vector<2x128xf32>
    %cst = arith.constant 0.000000e+00 : f32
    %30 = vector.broadcast %cst : f32 to vector<2x128xf32>
    %31 = arith.select %28, %29, %30 : vector<2x128xi1>, vector<2x128xf32>
    %32 = vector.extract_strided_slice %25 {offsets = [2, 0], sizes = [2, 128], strides = [1, 1]} : vector<8x128xf32> to vector<2x128xf32>
    %33 = arith.addf %26, %32 : vector<2x128xf32>
    %c1_i32 = arith.constant 1 : i32
    %34 = vector.broadcast %c1_i32 : i32 to vector<2x128xi32>
    %35 = arith.cmpi eq, %6, %34 : vector<2x128xi32>
    %36 = vector.extract_strided_slice %4 {offsets = [2, 0], sizes = [2, 128], strides = [1, 1]} : vector<8x128xf32> to vector<2x128xf32>
    %cst_8 = arith.constant 0.000000e+00 : f32
    %37 = vector.broadcast %cst_8 : f32 to vector<2x128xf32>
    %38 = arith.select %35, %36, %37 : vector<2x128xi1>, vector<2x128xf32>
    %39 = arith.addf %31, %38 : vector<2x128xf32>
    %40 = vector.extract_strided_slice %25 {offsets = [4, 0], sizes = [2, 128], strides = [1, 1]} : vector<8x128xf32> to vector<2x128xf32>
    %41 = arith.addf %33, %40 : vector<2x128xf32>
    %c2_i32 = arith.constant 2 : i32
    %42 = vector.broadcast %c2_i32 : i32 to vector<2x128xi32>
    %43 = arith.cmpi eq, %6, %42 : vector<2x128xi32>
    %44 = vector.extract_strided_slice %4 {offsets = [4, 0], sizes = [2, 128], strides = [1, 1]} : vector<8x128xf32> to vector<2x128xf32>
    %cst_9 = arith.constant 0.000000e+00 : f32
    %45 = vector.broadcast %cst_9 : f32 to vector<2x128xf32>
    %46 = arith.select %43, %44, %45 : vector<2x128xi1>, vector<2x128xf32>
    %47 = arith.addf %39, %46 : vector<2x128xf32>
    %48 = vector.extract_strided_slice %25 {offsets = [6, 0], sizes = [2, 128], strides = [1, 1]} : vector<8x128xf32> to vector<2x128xf32>
    %49 = arith.addf %41, %48 : vector<2x128xf32>
    %c3_i32 = arith.constant 3 : i32
    %50 = vector.broadcast %c3_i32 : i32 to vector<2x128xi32>
    %51 = arith.cmpi eq, %6, %50 : vector<2x128xi32>
    %52 = vector.extract_strided_slice %4 {offsets = [6, 0], sizes = [2, 128], strides = [1, 1]} : vector<8x128xf32> to vector<2x128xf32>
    %cst_10 = arith.constant 0.000000e+00 : f32
    %53 = vector.broadcast %cst_10 : f32 to vector<2x128xf32>
    %54 = arith.select %51, %52, %53 : vector<2x128xi1>, vector<2x128xf32>
    %55 = arith.addf %47, %54 : vector<2x128xf32>
    %56 = math.log %49 : vector<2x128xf32>
    %57 = arith.addf %22, %56 : vector<2x128xf32>
    %58 = arith.subf %57, %55 : vector<2x128xf32>
    %cst_11 = arith.constant 0.000000e+00 : f32
    %59 = vector.broadcast %cst_11 : f32 to vector<2x128xf32>
    %60 = arith.select %15, %58, %59 : vector<2x128xi1>, vector<2x128xf32>
    %c0_12 = arith.constant 0 : index
    %c0_13 = arith.constant 0 : index
    %c0_14 = arith.constant 0 : index
    %61 = vector.load %arg6[%c0_12, %c0_13, %c0_14] : memref<1x1x1xf32, #tpu.memory_space<vmem>>, vector<1x1x1xf32>
    %62 = vector.shape_cast %60 : vector<2x128xf32> to vector<1x2x128xf32>
    %cst_15 = arith.constant dense<0.000000e+00> : vector<1xf32>
    %63 = vector.multi_reduction <add>, %62, %cst_15 [1, 2] : vector<1x2x128xf32> to vector<1xf32>
    %64 = vector.shape_cast %63 : vector<1xf32> to vector<1x1x1xf32>
    %65 = vector.extract %64[0, 0, 0] : f32 from vector<1x1x1xf32>
    %66 = vector.broadcast %65 : f32 to vector<1x1x1xf32>
    %67 = arith.addf %61, %66 : vector<1x1x1xf32>
    %c0_16 = arith.constant 0 : index
    %c0_17 = arith.constant 0 : index
    %c0_18 = arith.constant 0 : index
    %68 = vector.load %arg6[%c0_16, %c0_17, %c0_18] : memref<1x1x1xf32, #tpu.memory_space<vmem>>, vector<1x1x1xf32>
    tpu.vector_store %arg6[%c0_16, %c0_17, %c0_18], %67 {strides = array<i32>} : memref<1x1x1xf32, #tpu.memory_space<vmem>>, vector<1x1x1xf32>,
    %c0_19 = arith.constant 0 : index
    %c0_20 = arith.constant 0 : index
    %c0_21 = arith.constant 0 : index
    %69 = vector.load %arg7[%c0_19, %c0_20, %c0_21] : memref<1x1x1xf32, #tpu.memory_space<vmem>>, vector<1x1x1xf32>
    %70 = arith.extui %15 : vector<2x128xi1> to vector<2x128xi32>
    %71 = arith.sitofp %70 : vector<2x128xi32> to vector<2x128xf32>
    %72 = vector.shape_cast %71 : vector<2x128xf32> to vector<1x2x128xf32>
    %cst_22 = arith.constant dense<0.000000e+00> : vector<1xf32>
    %73 = vector.multi_reduction <add>, %72, %cst_22 [1, 2] : vector<1x2x128xf32> to vector<1xf32>
    %74 = vector.shape_cast %73 : vector<1xf32> to vector<1x1x1xf32>
    %75 = vector.extract %74[0, 0, 0] : f32 from vector<1x1x1xf32>
    %76 = vector.broadcast %75 : f32 to vector<1x1x1xf32>
    %77 = arith.addf %69, %76 : vector<1x1x1xf32>
    %c0_23 = arith.constant 0 : index
    %c0_24 = arith.constant 0 : index
    %c0_25 = arith.constant 0 : index
    %78 = vector.load %arg7[%c0_23, %c0_24, %c0_25] : memref<1x1x1xf32, #tpu.memory_space<vmem>>, vector<1x1x1xf32>
    tpu.vector_store %arg7[%c0_23, %c0_24, %c0_25], %77 {strides = array<i32>} : memref<1x1x1xf32, #tpu.memory_space<vmem>>, vector<1x1x1xf32>,
    return
  }
  func.func @transform_0(%arg0: i32, %arg1: i32) -> (i32, i32, i32) {
    %c0_i32 = arith.constant 0 : i32
    %c0_i32_0 = arith.constant 0 : i32
    return %arg0, %c0_i32, %arg1 : i32, i32, i32
  }
  func.func @transform_1(%arg0: i32, %arg1: i32) -> (i32, i32, i32) {
    %c0_i32 = arith.constant 0 : i32
    %c0_i32_0 = arith.constant 0 : i32
    return %arg0, %c0_i32, %arg1 : i32, i32, i32
  }
  func.func @transform_2(%arg0: i32, %arg1: i32) -> (i32, i32, i32) {
    %c0_i32 = arith.constant 0 : i32
    %c0_i32_0 = arith.constant 0 : i32
    %c0_i32_1 = arith.constant 0 : i32
    return %arg0, %c0_i32, %c0_i32_0 : i32, i32, i32
  }
  func.func @transform_3(%arg0: i32, %arg1: i32) -> (i32, i32, i32) {
    %c0_i32 = arith.constant 0 : i32
    %c0_i32_0 = arith.constant 0 : i32
    %c0_i32_1 = arith.constant 0 : i32
    return %arg0, %c0_i32, %c0_i32_0 : i32, i32, i32
  }
  func.func @transform_4(%arg0: i32, %arg1: i32) -> (i32, i32, i32) {
    %c0_i32 = arith.constant 0 : i32
    %c0_i32_0 = arith.constant 0 : i32
    %c0_i32_1 = arith.constant 0 : i32
    return %arg0, %c0_i32, %c0_i32_0 : i32, i32, i32
  }
  func.func @transform_5(%arg0: i32, %arg1: i32) -> (i32, i32, i32) {
    %c0_i32 = arith.constant 0 : i32
    %c0_i32_0 = arith.constant 0 : i32
    %c0_i32_1 = arith.constant 0 : i32
    return %arg0, %c0_i32, %c0_i32_0 : i32, i32, i32
  }
  func.func @transform_6(%arg0: i32, %arg1: i32) -> (i32, i32, i32) {
    %c0_i32 = arith.constant 0 : i32
    %c0_i32_0 = arith.constant 0 : i32
    %c0_i32_1 = arith.constant 0 : i32
    return %arg0, %c0_i32, %c0_i32_0 : i32, i32, i32
  }
}

</mosaic_0001>

<llo_original>
// kernel: tpu_custom_call.1
$region0: #{tpu_custom_call.1}
  #allocation0 [shape = 'u32[]', space=smem, size = 0x4, offset = 0x4, fixed_abs, tag = 'smem constant byte address 0x4 - core index']
  #allocation1 [shape = 'u32[72,128]{1,0:T(1,128)}', space=vmem, size = 0x9000, scoped, tag = 'internal scratch']
  %s0 = inlined_call_operand.hbm [shape: f32[2,8,128], index: 0, kind: input, shape index: {}]
  %s1 = inlined_call_operand.hbm [shape: s32[2,2,128], index: 1, kind: input, shape index: {}]
  %s2 = inlined_call_operand.hbm [shape: f32[2,1,256], index: 2, kind: input, shape index: {}]
  %s3 = inlined_call_operand.hbm [shape: f32[2,1,256], index: 3, kind: input, shape index: {}]
  %s4 = inlined_call_operand.vmem [shape: f32[2,1,1], index: 4, kind: output, shape index: {0}]
  %s5 = inlined_call_operand.vmem [shape: f32[2,1,1], index: 5, kind: output, shape index: {1}]
  %s6 = inlined_call_operand.vmem [shape: f32[2,1,1], index: 6, kind: output, shape index: {2}]
  %7 = xla_tuple %s4, %s5, %s6
  %s8 = sld [smem:[#allocation0]]
  $region85: #{tpu_custom_call.1} parent=0
    _
  %s10 = ssub.s32 1, %s8
  %s11 = scalar_select 0, %s10, %s8
  $region1: #{tpu_custom_call.1} parent=0
    #allocation2 [shape = 'u8[8192]{0}', space=vmem, size = 0x2000, scoped, tag = 'input window, operand 0']
    #allocation3 [shape = 's32[2]{0}', space=sflag, size = 0x8, scoped, tag = 'scoped memory for tpu_custom_call.1']
    #allocation4 [shape = 'u8[2048]{0}', space=vmem, size = 0x800, scoped, tag = 'input window, operand 1']
    #allocation5 [shape = 's32[2]{0}', space=sflag, size = 0x8, scoped, tag = 'scoped memory for tpu_custom_call.1']
    #allocation6 [shape = 'u8[2048]{0}', space=vmem, size = 0x800, scoped, tag = 'input window, operand 2']
    #allocation7 [shape = 'u8[2048]{0}', space=vmem, size = 0x800, scoped, tag = 'input window, operand 3']
    #allocation8 [shape = 's32[2]{0}', space=sflag, size = 0x8, scoped, tag = 'scoped memory for tpu_custom_call.1']
    %12 = vsyncpa [#allocation3], 0
    %s13 = scalar_lea.sflag [#allocation3], 1
    %14 = vsyncpa %s13, 0
    %15 = vsyncpa [#allocation5], 0
    %s16 = scalar_lea.sflag [#allocation5], 1
    %17 = vsyncpa %s16, 0
    %18 = vsyncpa [#allocation8], 0
    %s19 = scalar_lea.sflag [#allocation8], 1
    %20 = vsyncpa %s19, 0
    loop: start=0, step=1, limit=4
    $region2: #{tpu_custom_call.1} parent=1 // loop_pre_header
      _
    $region3: #{tpu_custom_call.1} parent=1 // loop_header
      %s22 = sphi 0, %s26
      %p23 = scmp.ge.s32.totalorder %s22, 4
      %s29 = sphi 0, %s41
      %s30 = sphi 0, %s37
      %s31 = sphi 0, %s29
      %s32 = sphi 0, %s30
      %s33 = sphi 0, %s31
      %s34 = sphi 0, %s32
      %s46 = sphi 0, %s48
      %s49 = sphi 0, %s46
      %s50 = sphi 0, %s49
      %s66 = sphi 0, %s50
      %s74 = sphi 0, %s76
      %s77 = sphi 0, %s74
      %s78 = sphi 0, %s77
      %s94 = sphi 0, %s78
      %s100 = sphi 0, %s102
      %s103 = sphi 0, %s100
      %s104 = sphi 0, %s103
      %s120 = sphi 0, %s104
      %s126 = sphi 0, %s128
      %s129 = sphi 0, %s126
      %s130 = sphi 0, %s129
      %s146 = sphi 0, %s130
      %s152 = sphi 0, %s154
      %s155 = sphi 0, %s152
      %s156 = sphi 0, %s155
      %s172 = sphi 0, %s156
      %s178 = sphi 0, %s180
      %s181 = sphi 0, %s178
      %s182 = sphi 0, %s181
      %s198 = sphi 0, %s182
      %s204 = sphi 0, %s206
      %s207 = sphi 0, %s204
      %s208 = sphi 0, %s207
      %s224 = sphi 0, %s208
    $region4: #{tpu_custom_call.1} parent=1 // loop_header_branch
      %25 = sbr.rel (%p23) target = $region8
    $region5: #{tpu_custom_call.1} parent=1 // loop_body
      %s27 = ssub.s32 %s22, 1
      %s28 = ssub.s32 %s22, 2
      %s35 = sadd.s32 1, %s30
      %p36 = scmp.ge.s32.totalorder %s35, 1
      %s37 = scalar_select %p36, 0, %s35
      %s38 = sadd.s32 1, %s29
      %s39 = scalar_select %p36, %s38, %s29
      %p40 = scmp.ge.s32.totalorder %s39, 2
      %s41 = scalar_select %p40, 0, %s39
      %s42 = ssub.s32 %s29, %s41
      %s43 = ssub.s32 %s30, %s37
      %s44 = sor.u32 %s42, %s43
      %p45 = scmp.eq.s32.totalorder %s44, 0
      %s47 = sadd.s32 %s46, 1
      %s48 = scalar_select %p45, %s46, %s47
      %p51 = pneg %p45
      %p52 = scmp.eq.s32.totalorder %s22, 1
      %p53 = por %p51, %p52
      %p54 = scmp.ne.s32.totalorder %s46, %s49
      %p55 = scmp.eq.s32.totalorder %s22, 0
      %p56 = por %p54, %p55
      %p57 = scmp.ne.s32.totalorder %s46, %s49
      %p58 = scmp.eq.s32.totalorder %s27, 1
      %p59 = por %p57, %p58
      %p60 = scmp.ne.s32.totalorder %s49, %s50
      %p61 = scmp.eq.s32.totalorder %s27, 0
      %p62 = por %p60, %p61
      %p63 = scmp.ne.s32.totalorder %s49, %s50
      %p64 = scmp.eq.s32.totalorder %s28, 1
      %p65 = por %p63, %p64
      %p67 = scmp.ne.s32.totalorder %s50, %s66
      %p68 = scmp.eq.s32.totalorder %s28, 0
      %p69 = por %p67, %p68
      %s70 = ssub.s32 %s29, %s41
      %s71 = ssub.s32 %s30, %s37
      %s72 = sor.u32 %s70, %s71
      %p73 = scmp.eq.s32.totalorder %s72, 0
      %s75 = sadd.s32 %s74, 1
      %s76 = scalar_select %p73, %s74, %s75
      %p79 = pneg %p73
      %p80 = scmp.eq.s32.totalorder %s22, 1
      %p81 = por %p79, %p80
      %p82 = scmp.ne.s32.totalorder %s74, %s77
      %p83 = scmp.eq.s32.totalorder %s22, 0
      %p84 = por %p82, %p83
      %p85 = scmp.ne.s32.totalorder %s74, %s77
      %p86 = scmp.eq.s32.totalorder %s27, 1
      %p87 = por %p85, %p86
      %p88 = scmp.ne.s32.totalorder %s77, %s78
      %p89 = scmp.eq.s32.totalorder %s27, 0
      %p90 = por %p88, %p89
      %p91 = scmp.ne.s32.totalorder %s77, %s78
      %p92 = scmp.eq.s32.totalorder %s28, 1
      %p93 = por %p91, %p92
      %p95 = scmp.ne.s32.totalorder %s78, %s94
      %p96 = scmp.eq.s32.totalorder %s28, 0
      %p97 = por %p95, %p96
      %s98 = ssub.s32 %s29, %s41
      %p99 = scmp.eq.s32.totalorder %s98, 0
      %s101 = sadd.s32 %s100, 1
      %s102 = scalar_select %p99, %s100, %s101
      %p105 = pneg %p99
      %p106 = scmp.eq.s32.totalorder %s22, 1
      %p107 = por %p105, %p106
      %p108 = scmp.ne.s32.totalorder %s100, %s103
      %p109 = scmp.eq.s32.totalorder %s22, 0
      %p110 = por %p108, %p109
      %p111 = scmp.ne.s32.totalorder %s100, %s103
      %p112 = scmp.eq.s32.totalorder %s27, 1
      %p113 = por %p111, %p112
      %p114 = scmp.ne.s32.totalorder %s103, %s104
      %p115 = scmp.eq.s32.totalorder %s27, 0
      %p116 = por %p114, %p115
      %p117 = scmp.ne.s32.totalorder %s103, %s104
      %p118 = scmp.eq.s32.totalorder %s28, 1
      %p119 = por %p117, %p118
      %p121 = scmp.ne.s32.totalorder %s104, %s120
      %p122 = scmp.eq.s32.totalorder %s28, 0
      %p123 = por %p121, %p122
      %s124 = ssub.s32 %s29, %s41
      %p125 = scmp.eq.s32.totalorder %s124, 0
      %s127 = sadd.s32 %s126, 1
      %s128 = scalar_select %p125, %s126, %s127
      %p131 = pneg %p125
      %p132 = scmp.eq.s32.totalorder %s22, 1
      %p133 = por %p131, %p132
      %p134 = scmp.ne.s32.totalorder %s126, %s129
      %p135 = scmp.eq.s32.totalorder %s22, 0
      %p136 = por %p134, %p135
      %p137 = scmp.ne.s32.totalorder %s126, %s129
      %p138 = scmp.eq.s32.totalorder %s27, 1
      %p139 = por %p137, %p138
      %p140 = scmp.ne.s32.totalorder %s129, %s130
      %p141 = scmp.eq.s32.totalorder %s27, 0
      %p142 = por %p140, %p141
      %p143 = scmp.ne.s32.totalorder %s129, %s130
      %p144 = scmp.eq.s32.totalorder %s28, 1
      %p145 = por %p143, %p144
      %p147 = scmp.ne.s32.totalorder %s130, %s146
      %p148 = scmp.eq.s32.totalorder %s28, 0
      %p149 = por %p147, %p148
      %s150 = ssub.s32 %s29, %s41
      %p151 = scmp.eq.s32.totalorder %s150, 0
      %s153 = sadd.s32 %s152, 1
      %s154 = scalar_select %p151, %s152, %s153
      %p157 = pneg %p151
      %p158 = scmp.eq.s32.totalorder %s22, 1
      %p159 = por %p157, %p158
      %p160 = scmp.ne.s32.totalorder %s152, %s155
      %p161 = scmp.eq.s32.totalorder %s22, 0
      %p162 = por %p160, %p161
      %p163 = scmp.ne.s32.totalorder %s152, %s155
      %p164 = scmp.eq.s32.totalorder %s27, 1
      %p165 = por %p163, %p164
      %p166 = scmp.ne.s32.totalorder %s155, %s156
      %p167 = scmp.eq.s32.totalorder %s27, 0
      %p168 = por %p166, %p167
      %p169 = scmp.ne.s32.totalorder %s155, %s156
      %p170 = scmp.eq.s32.totalorder %s28, 1
      %p171 = por %p169, %p170
      %p173 = scmp.ne.s32.totalorder %s156, %s172
      %p174 = scmp.eq.s32.totalorder %s28, 0
      %p175 = por %p173, %p174
      %s176 = ssub.s32 %s29, %s41
      %p177 = scmp.eq.s32.totalorder %s176, 0
      %s179 = sadd.s32 %s178, 1
      %s180 = scalar_select %p177, %s178, %s179
      %p183 = pneg %p177
      %p184 = scmp.eq.s32.totalorder %s22, 1
      %p185 = por %p183, %p184
      %p186 = scmp.ne.s32.totalorder %s178, %s181
      %p187 = scmp.eq.s32.totalorder %s22, 0
      %p188 = por %p186, %p187
      %p189 = scmp.ne.s32.totalorder %s178, %s181
      %p190 = scmp.eq.s32.totalorder %s27, 1
      %p191 = por %p189, %p190
      %p192 = scmp.ne.s32.totalorder %s181, %s182
      %p193 = scmp.eq.s32.totalorder %s27, 0
      %p194 = por %p192, %p193
      %p195 = scmp.ne.s32.totalorder %s181, %s182
      %p196 = scmp.eq.s32.totalorder %s28, 1
      %p197 = por %p195, %p196
      %p199 = scmp.ne.s32.totalorder %s182, %s198
      %p200 = scmp.eq.s32.totalorder %s28, 0
      %p201 = por %p199, %p200
      %s202 = ssub.s32 %s29, %s41
      %p203 = scmp.eq.s32.totalorder %s202, 0
      %s205 = sadd.s32 %s204, 1
      %s206 = scalar_select %p203, %s204, %s205
      %p209 = pneg %p203
      %p210 = scmp.eq.s32.totalorder %s22, 1
      %p211 = por %p209, %p210
      %p212 = scmp.ne.s32.totalorder %s204, %s207
      %p213 = scmp.eq.s32.totalorder %s22, 0
      %p214 = por %p212, %p213
      %p215 = scmp.ne.s32.totalorder %s204, %s207
      %p216 = scmp.eq.s32.totalorder %s27, 1
      %p217 = por %p215, %p216
      %p218 = scmp.ne.s32.totalorder %s207, %s208
      %p219 = scmp.eq.s32.totalorder %s27, 0
      %p220 = por %p218, %p219
      %p221 = scmp.ne.s32.totalorder %s207, %s208
      %p222 = scmp.eq.s32.totalorder %s28, 1
      %p223 = por %p221, %p222
      %p225 = scmp.ne.s32.totalorder %s208, %s224
      %p226 = scmp.eq.s32.totalorder %s28, 0
      %p227 = por %p225, %p226
      %p228 = scmp.le.s32.totalorder 1, %s22
      %p229 = scmp.lt.s32.totalorder %s22, 3
      %p230 = pnand %p228, %p229
      %p231 = pneg %p230
      // Predicated region
      $region9: #{tpu_custom_call.1} parent=5 // pred_check
        _
      $region10: #{tpu_custom_call.1} parent=5 // pred_check_branch
        %233 = sbr.rel (%p230) target = $region12
      $region11: #{tpu_custom_call.1} parent=5 // pred_region
        %s234 = ssub.s32 %s22, 1
      $region12: #{tpu_custom_call.1} parent=5 // pred_fallthru
        _
      %p235 = scmp.lt.s32.totalorder %s22, 2
      // Predicated region
      $region13: #{tpu_custom_call.1} parent=5 // pred_check
        %p236 = pneg %p235
      $region14: #{tpu_custom_call.1} parent=5 // pred_check_branch
        %238 = sbr.rel (%p236) target = $region16
      $region15: #{tpu_custom_call.1} parent=5 // pred_region
        // Predicated region
        $region17: #{tpu_custom_call.1} parent=15 // pred_check
          %p239 = pneg %p56
        $region18: #{tpu_custom_call.1} parent=15 // pred_check_branch
          %241 = sbr.rel (%p239) target = $region20
        $region19: #{tpu_custom_call.1} parent=15 // pred_region
          %s242 = sand.u32 %s46, 1
          %s243 = scalar_lea.sflag [#allocation3], %s242
          %s244 = sand.u32 %s46, 1
          %s245 = smul.addr %s244, 8
          %s246 = scalar_lea.vmem [#allocation2], %s245
          %248 = vsyncadd %s243, 0
          %s249 = sadd.s32 %s30, %s29
          %s250 = smul.addr %s249, 8
          %s251 = scalar_lea.hbm %s0, %s250
          %s253 = sshll.u32 %s251, 4
          %s254 = int_to_ptr.hbm [resolvable:$true] %s253
          %s255 = sshll.u32 %s246, 4
          %s256 = int_to_ptr.vmem [resolvable:$true] %s255
          %258 = dma.hbm_to_vmem [thread:$0]  %s254, 128, %s256, %s243
        $region20: #{tpu_custom_call.1} parent=15 // pred_fallthru
          _
        // Predicated region
        $region21: #{tpu_custom_call.1} parent=15 // pred_check
          %p259 = pneg %p84
        $region22: #{tpu_custom_call.1} parent=15 // pred_check_branch
          %261 = sbr.rel (%p259) target = $region24
        $region23: #{tpu_custom_call.1} parent=15 // pred_region
          %s262 = sand.u32 %s22, 1
          %s263 = scalar_lea.sflag [#allocation5], %s262
          %s264 = sand.u32 %s74, 1
          %s265 = smul.addr %s264, 2
          %s266 = scalar_lea.vmem [#allocation4], %s265
          %268 = vsyncadd %s263, 0
          %s269 = sadd.s32 %s30, %s29
          %s270 = smul.addr %s269, 2
          %s271 = scalar_lea.hbm %s1, %s270
          %s273 = sshll.u32 %s271, 4
          %s274 = int_to_ptr.hbm [resolvable:$true] %s273
          %s275 = sshll.u32 %s266, 4
          %s276 = int_to_ptr.vmem [resolvable:$true] %s275
          %278 = dma.hbm_to_vmem [thread:$0]  %s274, 32, %s276, %s263
        $region24: #{tpu_custom_call.1} parent=15 // pred_fallthru
          _
        // Predicated region
        $region25: #{tpu_custom_call.1} parent=15 // pred_check
          %p279 = pneg %p110
        $region26: #{tpu_custom_call.1} parent=15 // pred_check_branch
          %281 = sbr.rel (%p279) target = $region28
        $region27: #{tpu_custom_call.1} parent=15 // pred_region
          %s282 = sand.u32 %s22, 1
          %s283 = scalar_lea.sflag [#allocation5], %s282
          %s284 = sand.u32 %s100, 1
          %s285 = smul.addr %s284, 2
          %s286 = scalar_lea.vmem [#allocation6], %s285
          %288 = vsyncadd %s283, 0
          %s289 = smul.addr %s29, 2
          %s290 = scalar_lea.hbm %s2, %s289
          %s292 = sshll.u32 %s290, 4
          %s293 = int_to_ptr.hbm [resolvable:$true] %s292
          %s294 = sshll.u32 %s286, 4
          %s295 = int_to_ptr.vmem [resolvable:$true] %s294
          %297 = dma.hbm_to_vmem [thread:$0]  %s293, 32, %s295, %s283
        $region28: #{tpu_custom_call.1} parent=15 // pred_fallthru
          _
        // Predicated region
        $region29: #{tpu_custom_call.1} parent=15 // pred_check
          %p298 = pneg %p136
        $region30: #{tpu_custom_call.1} parent=15 // pred_check_branch
          %300 = sbr.rel (%p298) target = $region32
        $region31: #{tpu_custom_call.1} parent=15 // pred_region
          %s301 = sand.u32 %s126, 1
          %s302 = scalar_lea.sflag [#allocation8], %s301
          %s303 = sand.u32 %s126, 1
          %s304 = smul.addr %s303, 2
          %s305 = scalar_lea.vmem [#allocation7], %s304
          %307 = vsyncadd %s302, 0
          %s308 = smul.addr %s29, 2
          %s309 = scalar_lea.hbm %s3, %s308
          %s311 = sshll.u32 %s309, 4
          %s312 = int_to_ptr.hbm [resolvable:$true] %s311
          %s313 = sshll.u32 %s305, 4
          %s314 = int_to_ptr.vmem [resolvable:$true] %s313
          %316 = dma.hbm_to_vmem [thread:$0]  %s312, 32, %s314, %s302
        $region32: #{tpu_custom_call.1} parent=15 // pred_fallthru
          _
      $region16: #{tpu_custom_call.1} parent=5 // pred_fallthru
        _
      %p317 = scmp.le.s32.totalorder 1, %s22
      %p318 = scmp.lt.s32.totalorder %s22, 3
      %p319 = pnand %p317, %p318
      %p320 = pneg %p319
      // Predicated region
      $region33: #{tpu_custom_call.1} parent=5 // pred_check
        _
      $region34: #{tpu_custom_call.1} parent=5 // pred_check_branch
        %322 = sbr.rel (%p319) target = $region36
      $region35: #{tpu_custom_call.1} parent=5 // pred_region
        %s323 = ssub.s32 %s22, 1
        %s324 = sand.u32 %s49, 1
        %s325 = scalar_lea.sflag [#allocation3], %s324
        %s326 = sand.u32 %s49, 1
        %s327 = smul.addr %s326, 8
        %s328 = scalar_lea.vmem [#allocation2], %s327
        // Predicated region
        $region37: #{tpu_custom_call.1} parent=35 // pred_check
          %p329 = pneg %p62
        $region38: #{tpu_custom_call.1} parent=35 // pred_check_branch
          %331 = sbr.rel (%p329) target = $region40
        $region39: #{tpu_custom_call.1} parent=35 // pred_region
          %333 = dma.done %s325, 128
        $region40: #{tpu_custom_call.1} parent=35 // pred_fallthru
          _
        %s334 = sand.u32 %s27, 1
        %s335 = scalar_lea.sflag [#allocation5], %s334
        %s336 = sand.u32 %s77, 1
        %s337 = smul.addr %s336, 2
        %s338 = scalar_lea.vmem [#allocation4], %s337
        // Predicated region
        $region41: #{tpu_custom_call.1} parent=35 // pred_check
          %p339 = pneg %p90
        $region42: #{tpu_custom_call.1} parent=35 // pred_check_branch
          %341 = sbr.rel (%p339) target = $region44
        $region43: #{tpu_custom_call.1} parent=35 // pred_region
          %343 = dma.done %s335, 32
        $region44: #{tpu_custom_call.1} parent=35 // pred_fallthru
          _
        %s344 = sand.u32 %s27, 1
        %s345 = scalar_lea.sflag [#allocation5], %s344
        %s346 = sand.u32 %s103, 1
        %s347 = smul.addr %s346, 2
        %s348 = scalar_lea.vmem [#allocation6], %s347
        // Predicated region
        $region45: #{tpu_custom_call.1} parent=35 // pred_check
          %p349 = pneg %p116
        $region46: #{tpu_custom_call.1} parent=35 // pred_check_branch
          %351 = sbr.rel (%p349) target = $region48
        $region47: #{tpu_custom_call.1} parent=35 // pred_region
          %353 = dma.done %s345, 32
        $region48: #{tpu_custom_call.1} parent=35 // pred_fallthru
          _
        %s354 = sand.u32 %s129, 1
        %s355 = scalar_lea.sflag [#allocation8], %s354
        %s356 = sand.u32 %s129, 1
        %s357 = smul.addr %s356, 2
        %s358 = scalar_lea.vmem [#allocation7], %s357
        // Predicated region
        $region49: #{tpu_custom_call.1} parent=35 // pred_check
          %p359 = pneg %p142
        $region50: #{tpu_custom_call.1} parent=35 // pred_check_branch
          %361 = sbr.rel (%p359) target = $region52
        $region51: #{tpu_custom_call.1} parent=35 // pred_region
          %363 = dma.done %s355, 32
        $region52: #{tpu_custom_call.1} parent=35 // pred_fallthru
          _
        %s364 = sand.u32 %s49, 1
        %s365 = scalar_lea.sflag [#allocation3], %s364
        %s366 = sand.u32 %s49, 1
        %s367 = smul.addr %s366, 8
        %s368 = scalar_lea.vmem [#allocation2], %s367
        %p369 = pneg %p62
        %p370 = pneg %p59
        %s371 = sand.u32 %s27, 1
        %s372 = scalar_lea.sflag [#allocation5], %s371
        %s373 = sand.u32 %s77, 1
        %s374 = smul.addr %s373, 2
        %s375 = scalar_lea.vmem [#allocation4], %s374
        %p376 = pneg %p90
        %p377 = pneg %p87
        %s378 = sand.u32 %s27, 1
        %s379 = scalar_lea.sflag [#allocation5], %s378
        %s380 = sand.u32 %s103, 1
        %s381 = smul.addr %s380, 2
        %s382 = scalar_lea.vmem [#allocation6], %s381
        %p383 = pneg %p116
        %p384 = pneg %p113
        %s385 = sand.u32 %s129, 1
        %s386 = scalar_lea.sflag [#allocation8], %s385
        %s387 = sand.u32 %s129, 1
        %s388 = smul.addr %s387, 2
        %s389 = scalar_lea.vmem [#allocation7], %s388
        %p390 = pneg %p142
        %p391 = pneg %p139
        %p392 = pneg %p168
        %p393 = pneg %p165
        %p394 = scmp.lt.s32.totalorder %s31, 1
        %s395 = scalar_select %p394, %s31, 1
        %s396 = scalar_lea.vmem %s4, %s395
        %p397 = pneg %p194
        %p398 = pneg %p191
        %p399 = scmp.lt.s32.totalorder %s31, 1
        %s400 = scalar_select %p399, %s31, 1
        %s401 = scalar_lea.vmem %s5, %s400
        %p402 = pneg %p220
        %p403 = pneg %p217
        %p404 = scmp.lt.s32.totalorder %s31, 1
        %s405 = scalar_select %p404, %s31, 1
        %s406 = scalar_lea.vmem %s6, %s405
        %p407 = scmp.lt.s32.totalorder %s31, 1
        %s408 = scalar_select %p407, %s31, 1
        %s409 = scalar_lea.vmem %s4, %s408
        %p410 = scmp.lt.s32.totalorder %s31, 1
        %s411 = scalar_select %p410, %s31, 1
        %s412 = scalar_lea.vmem %s5, %s411
        %p413 = scmp.lt.s32.totalorder %s31, 1
        %s414 = scalar_select %p413, %s31, 1
        %s415 = scalar_lea.vmem %s6, %s414
        %p416 = scmp.eq.s32.totalorder %s32, 0
        // Predicated region
        $region53: #{tpu_custom_call.1} parent=35 // pred_check
          %p417 = pneg %p416
        $region54: #{tpu_custom_call.1} parent=35 // pred_check_branch
          %419 = sbr.rel (%p417) target = $region56
        $region55: #{tpu_custom_call.1} parent=35 // pred_region
          %vm420 = vcmask 0
          %421 = vst.msk [vmem:[%s409] sm:$0x1] %vm420, 0.0
          %422 = vst.msk [vmem:[%s412] sm:$0x1] %vm420, 0.0
          %v423 = vld [vmem:[%s348] sm:$0x3]
          %v424 = vld [vmem:[%s358] sm:$0x3]
          %v425 = vmax.f32 %v424, -30.0
          %v426 = vmin.f32 %v425, 20.0
          %v427 = vmul.f32 %v423, %v423
          %v428 = vmul.f32 %v426, 1.442695
          %v429 = vpow.pop %v428
          %v430 = vadd.f32 %v427, %v429
          %v431 = vsub.f32 %v430, 1.0
          %v432 = vsub.f32 %v431, %v426
          %v433 = vmul.f32 %v432, 0.5
          %v435 = vperm.slane %v433, 0
          %v436 = vperm.slane %v433, 1
          %vm439 = vcmask 1040384
          %v440 = vsel %vm439, %v435, 0.0
          %v441 = vsel %vm439, %v436, 0.0
          %v442 = vadd.f32 %v440, %v441
          %443 = vadd.xlane.f32.xlu0 %v442
          %v444 = vpop.xlane.xlu0 %443
          %v445 = vrot.slane %v444, 4
          %v446 = vadd.f32 %v444, %v445
          %v447 = vrot.slane %v446, 2
          %v448 = vadd.f32 %v446, %v447
          %v449 = vrot.slane %v448, 1
          %v450 = vadd.f32 %v448, %v449
          %s451 = vtos %v450
          %v452 = vstv %s451
          %453 = vst.msk [vmem:[%s415] sm:$0x1] %vm420, %v452
        $region56: #{tpu_custom_call.1} parent=35 // pred_fallthru
          _
        %v454 = vld [vmem:[%s328] sm:$0xff]
        %v455 = vld [vmem:[%s338] sm:$0x3]
        %s456 = smul.u32 %s32, 128
        %v457 = vlaneseq
        %v458 = vand.u32 %v457, 127
        %v459 = vstv %s456
        %v460 = vadd.s32 %v459, %v458
        %vm461 = vcmp.ne.s32.totalorder %v455, 4294967196
        %vm462 = vcmp.lt.s32.totalorder %v460, 128
        %vm463 = vmand %vm461, %vm462
        %v465 = vrot.slane %v454, 2
        %v467 = vmax.f32 %v454, %v465
        %v468 = vrot.slane %v454, 4
        %v470 = vmax.f32 %v467, %v468
        %v471 = vrot.slane %v454, 6
        %v473 = vmax.f32 %v470, %v471
        %v475 = vrot.slane %v473, 6
        %v477 = vrot.slane %v473, 4
        %v479 = vrot.slane %v473, 2
        %vm481 = vcmask 1041408
        %v482 = vsel %vm481, %v473, %v475
        %vm483 = vcmask 1043456
        %v484 = vsel %vm483, %v482, %v477
        %vm485 = vcmask 1045504
        %v486 = vsel %vm485, %v484, %v479
        %v487 = vsub.f32 %v454, %v486
        %v488 = vmul.f32 %v487, 1.442695
        %v489 = vpow.pop %v488
        %vm490 = vcmp.eq.s32.totalorder %v455, 0
        %v491 = vsel %vm490, %v454, 0.0
        %v493 = vrot.slane %v489, 2
        %v495 = vadd.f32 %v489, %v493
        %vm496 = vcmp.eq.s32.totalorder %v455, 1
        %v497 = vsel %vm496, %v465, 0.0
        %v498 = vadd.f32 %v491, %v497
        %v499 = vrot.slane %v489, 4
        %v501 = vadd.f32 %v495, %v499
        %vm502 = vcmp.eq.s32.totalorder %v455, 2
        %v503 = vsel %vm502, %v468, 0.0
        %v504 = vadd.f32 %v498, %v503
        %v505 = vrot.slane %v489, 6
        %v507 = vadd.f32 %v501, %v505
        %vm508 = vcmp.eq.s32.totalorder %v455, 3
        %v509 = vsel %vm508, %v471, 0.0
        %v510 = vadd.f32 %v504, %v509
        %v511 = vlog2.pop %v507
        %v512 = vmul.f32 %v511, 0.6931472
        %v513 = vadd.f32 %v473, %v512
        %v514 = vsub.f32 %v513, %v510
        %v515 = vsel %vm463, %v514, 0.0
        %v516 = vld [vmem:[%s409] sm:$0x1]
        %v517 = vsel %vm481, %v515, 0.0
        %518 = vadd.xlane.f32.xlu0 %v517
        %v519 = vpop.xlane.xlu0 %518
        %v520 = vrot.slane %v519, 4
        %v521 = vadd.f32 %v519, %v520
        %v522 = vrot.slane %v521, 2
        %v523 = vadd.f32 %v521, %v522
        %v524 = vrot.slane %v523, 1
        %v525 = vadd.f32 %v523, %v524
        %s526 = vtos %v525
        %v527 = vstv %s526
        %v528 = vadd.f32 %v516, %v527
        %vm529 = vcmask 0
        %530 = vst.msk [vmem:[%s409] sm:$0x1] %vm529, %v528
        %v531 = vld [vmem:[%s412] sm:$0x1]
        %v532 = vsel %vm463, 1, 0
        %v533 = vcvt.s32.f32 %v532
        %v534 = vsel %vm481, %v533, 0.0
        %535 = vadd.xlane.f32.xlu0 %v534
        %v536 = vpop.xlane.xlu0 %535
        %v537 = vrot.slane %v536, 4
        %v538 = vadd.f32 %v536, %v537
        %v539 = vrot.slane %v538, 2
        %v540 = vadd.f32 %v538, %v539
        %v541 = vrot.slane %v540, 1
        %v542 = vadd.f32 %v540, %v541
        %s543 = vtos %v542
        %v544 = vstv %s543
        %v545 = vadd.f32 %v531, %v544
        %546 = vst.msk [vmem:[%s412] sm:$0x1] %vm529, %v545
        %p547 = scmp.lt.s32.totalorder %s31, 1
        %s548 = scalar_select %p547, %s31, 1
        %s549 = scalar_lea.vmem %s4, %s548
        %p550 = scmp.lt.s32.totalorder %s31, 1
        %s551 = scalar_select %p550, %s31, 1
        %s552 = scalar_lea.vmem %s5, %s551
        %p553 = scmp.lt.s32.totalorder %s31, 1
        %s554 = scalar_select %p553, %s31, 1
        %s555 = scalar_lea.vmem %s6, %s554
        // Predicated region
        $region57: #{tpu_custom_call.1} parent=35 // pred_check
          %p556 = pneg %p165
        $region58: #{tpu_custom_call.1} parent=35 // pred_check_branch
          %558 = sbr.rel (%p556) target = $region60
        $region59: #{tpu_custom_call.1} parent=35 // pred_region
          _
        $region60: #{tpu_custom_call.1} parent=35 // pred_fallthru
          _
        // Predicated region
        $region61: #{tpu_custom_call.1} parent=35 // pred_check
          %p559 = pneg %p191
        $region62: #{tpu_custom_call.1} parent=35 // pred_check_branch
          %561 = sbr.rel (%p559) target = $region64
        $region63: #{tpu_custom_call.1} parent=35 // pred_region
          _
        $region64: #{tpu_custom_call.1} parent=35 // pred_fallthru
          _
        // Predicated region
        $region65: #{tpu_custom_call.1} parent=35 // pred_check
          %p562 = pneg %p217
        $region66: #{tpu_custom_call.1} parent=35 // pred_check_branch
          %564 = sbr.rel (%p562) target = $region68
        $region67: #{tpu_custom_call.1} parent=35 // pred_region
          _
        $region68: #{tpu_custom_call.1} parent=35 // pred_fallthru
          _
      $region36: #{tpu_custom_call.1} parent=5 // pred_fallthru
        _
      %p565 = scmp.le.s32.totalorder 2, %s22
      // Predicated region
      $region69: #{tpu_custom_call.1} parent=5 // pred_check
        %p566 = pneg %p565
      $region70: #{tpu_custom_call.1} parent=5 // pred_check_branch
        %568 = sbr.rel (%p566) target = $region72
      $region71: #{tpu_custom_call.1} parent=5 // pred_region
        %s569 = ssub.s32 %s22, 2
        // Predicated region
        $region73: #{tpu_custom_call.1} parent=71 // pred_check
          %p570 = pneg %p171
        $region74: #{tpu_custom_call.1} parent=71 // pred_check_branch
          %572 = sbr.rel (%p570) target = $region76
        $region75: #{tpu_custom_call.1} parent=71 // pred_region
          %p573 = scmp.lt.s32.totalorder %s33, 1
          %s574 = scalar_select %p573, %s33, 1
          %s575 = scalar_lea.vmem %s4, %s574
        $region76: #{tpu_custom_call.1} parent=71 // pred_fallthru
          _
        // Predicated region
        $region77: #{tpu_custom_call.1} parent=71 // pred_check
          %p576 = pneg %p197
        $region78: #{tpu_custom_call.1} parent=71 // pred_check_branch
          %578 = sbr.rel (%p576) target = $region80
        $region79: #{tpu_custom_call.1} parent=71 // pred_region
          %p579 = scmp.lt.s32.totalorder %s33, 1
          %s580 = scalar_select %p579, %s33, 1
          %s581 = scalar_lea.vmem %s5, %s580
        $region80: #{tpu_custom_call.1} parent=71 // pred_fallthru
          _
        // Predicated region
        $region81: #{tpu_custom_call.1} parent=71 // pred_check
          %p582 = pneg %p223
        $region82: #{tpu_custom_call.1} parent=71 // pred_check_branch
          %584 = sbr.rel (%p582) target = $region84
        $region83: #{tpu_custom_call.1} parent=71 // pred_region
          %p585 = scmp.lt.s32.totalorder %s33, 1
          %s586 = scalar_select %p585, %s33, 1
          %s587 = scalar_lea.vmem %s6, %s586
        $region84: #{tpu_custom_call.1} parent=71 // pred_fallthru
          _
      $region72: #{tpu_custom_call.1} parent=5 // pred_fallthru
        _
    $region6: #{tpu_custom_call.1} parent=1 // loop_footer
      %s26 = sadd.s32 1, %s22
    $region7: #{tpu_custom_call.1} parent=1 // loop_footer_branch
      %21 = sbr.rel target = $region3
    $region8: #{tpu_custom_call.1} parent=1 // loop_exit
      _
    %588 = vsyncpa [#allocation3], 1
    %s589 = scalar_lea.sflag [#allocation3], 1
    %590 = vsyncpa %s589, 1
    %591 = vsyncpa [#allocation5], 1
    %s592 = scalar_lea.sflag [#allocation5], 1
    %593 = vsyncpa %s592, 1
    %594 = vsyncpa [#allocation8], 1
    %s595 = scalar_lea.sflag [#allocation8], 1
    %596 = vsyncpa %s595, 1

</llo_original>
